<compile_context>
chip_gen: v7x
topology: tpu7x:2x2x1
jax: 0.10.0
libtpu: 0.0.40
codegen_flags: <defaults>
</compile_context>

<pallas_src>
import numpy as np
import jax
import jax.numpy as jnp
from jax.experimental import pallas as pl
from jax.experimental.pallas import tpu as pltpu

LANE = 128           # lane width: every matmul output dim is padded to k*128
MAX_TILE_ROWS = 256  # streamed row-tile size over the flattened (B*S) axis


def _round_up(x, m):
    return ((x + m - 1) // m) * m


def _resident_spec(shape):
    """Constant-index (weight/bias) block: single-buffer it when supported."""
    index_map = lambda i: (0, 0)
    if hasattr(pl, "Buffered"):
        try:
            return pl.BlockSpec(shape, index_map, pipeline_mode=pl.Buffered(1))
        except TypeError:
            pass
    return pl.BlockSpec(shape, index_map)


# ---------------------------------------------------------------------------
# Fused Pallas kernel: GCN (adjacency folded into weights) + all linear heads
# ---------------------------------------------------------------------------
def cde_fused_kernel(z_ref, wbig_ref, bias_ref, whead_ref, o_ref):
    # z_ref:     (T, NF)   bf16 streamed row tile of flattened z
    # wbig_ref:  (NF, W)   bf16 adjacency-folded GCN weight (zero padded)
    # bias_ref:  (2, W)    f32: row 0 = tiled GCN bias, row 1 = head biases
    # whead_ref: (W, W)    bf16 block-diagonal head weights (zero padded)
    # o_ref:     (T, W)    f32 lane-dense output slab
    gf = jnp.tanh(
        jnp.dot(z_ref[...], wbig_ref[...], preferred_element_type=jnp.float32)
        + bias_ref[0:1, :])
    o_ref[...] = (
        jnp.dot(gf.astype(jnp.bfloat16), whead_ref[...],
                preferred_element_type=jnp.float32)
        + bias_ref[1:2, :])


def cde_forward_fused(z2d, w_big, bias2, w_head, tile_rows):
    """z2d: (R, NF) bf16, R a multiple of tile_rows -> (R, W) f32 padded slab."""
    R, NF = z2d.shape
    W = w_big.shape[1]
    grid = (R // tile_rows,)

    weight_bytes = (NF * W + W * W) * 2 + 2 * W * 4
    z_tile_bytes = tile_rows * NF * 2 * 2      # bf16, double buffered
    out_tile_bytes = tile_rows * W * 4 * 2     # f32, double buffered
    vmem_limit = int(min(
        max(2 * (z_tile_bytes + out_tile_bytes + weight_bytes) + (8 << 20),
            16 << 20),
        96 << 20))

    cost = pl.CostEstimate(
        flops=2 * R * (NF * W + W * W),
        transcendentals=R * W,
        bytes_accessed=R * NF * 2 + R * W * 4 + weight_bytes)

    return pl.pallas_call(
        cde_fused_kernel,
        out_shape=jax.ShapeDtypeStruct((R, W), jnp.float32),
        grid_spec=pltpu.PrefetchScalarGridSpec(
            num_scalar_prefetch=0,
            grid=grid,
            in_specs=[
                pl.BlockSpec((tile_rows, NF), lambda i: (i, 0)),  # streamed z
                _resident_spec((NF, W)),                          # W_big
                _resident_spec((2, W)),                           # biases
                _resident_spec((W, W)),                           # W_head
            ],
            out_specs=pl.BlockSpec((tile_rows, W), lambda i: (i, 0)),
        ),
        compiler_params=pltpu.CompilerParams(
            dimension_semantics=("parallel",),   # v7x: 2 TCs split the row tiles
            vmem_limit_bytes=vmem_limit),
        cost_estimate=cost,
    )(z2d, w_big, bias2, w_head)


# ---------------------------------------------------------------------------
# CDE_func (emb / matmul configuration)
# ---------------------------------------------------------------------------
def build_norm_adj(edge_index, num_node):
    """dgl.add_self_loop + GraphConv(norm='both'): D_in^{-1/2} A D_out^{-1/2}."""
    # TODO(synk): validated only against the in-file reference, not DGL itself.
    A = np.zeros((num_node, num_node), dtype=np.float32)
    src, dst = edge_index
    for s, d in zip(src, dst):
        A[d, s] = 1.0                                  # message src -> dst
    A = A + np.eye(num_node, dtype=np.float32)         # self-loops
    in_deg = A.sum(axis=1)
    out_deg = A.sum(axis=0)
    din = 1.0 / np.sqrt(np.maximum(in_deg, 1e-12))
    dout = 1.0 / np.sqrt(np.maximum(out_deg, 1e-12))
    return jnp.asarray(np.diag(din) @ A @ np.diag(dout))


class CDEFuncPallas:
    def __init__(self, input_dim, matmul_dim, edge_index, num_node,
                 graph_hidden_dim, key):
        assert len(matmul_dim) <= num_node, \
            "each head indexes a node of the graph output: need len(matmul_dim) <= num_node"
        self.input_dim = input_dim
        self.matmul_dim = list(matmul_dim)
        self.num_node = num_node
        self.graph_output_dim = graph_hidden_dim
        self.adj = build_norm_adj(edge_index, num_node)

        keys = jax.random.split(key, 2 + 2 * len(self.matmul_dim))
        # graph_func parameters (GraphConv)
        self.wg = 0.1 * jax.random.normal(
            keys[0], (input_dim, graph_hidden_dim), jnp.float32)
        self.bg = 0.1 * jax.random.normal(
            keys[1], (graph_hidden_dim,), jnp.float32)
        # per-head Linear parameters: graph_output_dim -> input_dim * d
        self.head_w, self.head_b = [], []
        for i, d in enumerate(self.matmul_dim):
            self.head_w.append(0.1 * jax.random.normal(
                keys[2 + 2 * i], (graph_hidden_dim, input_dim * d), jnp.float32))
            self.head_b.append(0.1 * jax.random.normal(
                keys[3 + 2 * i], (input_dim * d,), jnp.float32))

        # ---- init-time folding of the fixed parameters into padded dense mats ----
        M, H, F, N = len(self.matmul_dim), graph_hidden_dim, input_dim, num_node
        MH = M * H
        self.head_offsets = np.cumsum([0] + [input_dim * d for d in self.matmul_dim])
        total_do = int(self.head_offsets[-1])
        # common lane-dense padded width for intermediate and output
        W = max(_round_up(MH, LANE), _round_up(total_do, LANE))
        self.padded_width = W

        a_heads = np.asarray(self.adj)[:M, :]                       # (M, N)
        wg_np = np.asarray(self.wg)
        w_big = np.zeros((N * F, W), dtype=np.float32)
        # W_big[n*F+f, m*H+h] = A[m,n] * Wg[f,h]
        w_big[:, :MH] = np.einsum('mn,fh->nfmh', a_heads, wg_np).reshape(N * F, MH)

        bias2 = np.zeros((2, W), dtype=np.float32)
        bias2[0, :MH] = np.tile(np.asarray(self.bg), M)

        w_head = np.zeros((W, W), dtype=np.float32)
        for i in range(M):
            o0, o1 = int(self.head_offsets[i]), int(self.head_offsets[i + 1])
            w_head[i * H:(i + 1) * H, o0:o1] = np.asarray(self.head_w[i])
            bias2[1, o0:o1] = np.asarray(self.head_b[i])

        # bf16 matmul operands (f32 accumulation happens inside the kernel)
        self.w_big_bf16 = jnp.asarray(w_big, dtype=jnp.bfloat16)
        self.w_head_bf16 = jnp.asarray(w_head, dtype=jnp.bfloat16)
        self.bias2 = jnp.asarray(bias2)

    @staticmethod
    def _choose_tile(rows):
        return min(MAX_TILE_ROWS, _round_up(rows, 8))

    def __call__(self, z_feature):
        # z_feature: (B, S, N, F)
        B, S, N, F = z_feature.shape
        BS = B * S
        z2d = z_feature.reshape(BS, N * F).astype(jnp.bfloat16)

        tile = self._choose_tile(BS)
        R = _round_up(BS, tile)
        if R > BS:
            z2d = jnp.pad(z2d, ((0, R - BS), (0, 0)))

        out = cde_forward_fused(z2d, self.w_big_bf16, self.bias2,
                                self.w_head_bf16, tile)            # (R, W) f32
        out = out[:BS]
        result = []
        for i, d in enumerate(self.matmul_dim):
            o0, o1 = int(self.head_offsets[i]), int(self.head_offsets[i + 1])
            result.append(out[:, o0:o1].reshape(B, S, self.input_dim, d))
        return result

    # pure-JAX f32 reference (unfused, mirrors the PyTorch module) for correctness
    def reference(self, z_feature):
        B, S, N, F = z_feature.shape
        h = jnp.einsum('bsnf,fh->bsnh', z_feature, self.wg)
        gf = jnp.tanh(jnp.einsum('mn,bsnh->bsmh', self.adj, h) + self.bg)
        result = []
        for i, d in enumerate(self.matmul_dim):
            out = gf[:, :, i, :] @ self.head_w[i] + self.head_b[i]
            result.append(out.reshape(B, S, self.input_dim, d))
        return result


if __name__ == "__main__":
    key = jax.random.PRNGKey(0)
    k_param, k_x = jax.random.split(key)

    batch, num_states, num_node, input_dim = 2, 8, 4, 4
    graph_hidden_dim = 32
    matmul_dim = [3, 5]
    edge_index = [[0, 1, 2, 3], [1, 2, 3, 0]]   # simple ring

    model = CDEFuncPallas(input_dim, matmul_dim, edge_index, num_node,
                          graph_hidden_dim, k_param)

    z_feature = jax.random.normal(
        k_x, (batch, num_states, num_node, input_dim), jnp.float32)

    outs = model(z_feature)
    outs = [jax.block_until_ready(o) for o in outs]

    refs = model.reference(z_feature)
    for o, r, d in zip(outs, refs, matmul_dim):
        assert o.shape == (batch, num_states, input_dim, d), o.shape
        # bf16 matmul operands -> looser tolerance than a pure-f32 comparison
        np.testing.assert_allclose(np.asarray(o), np.asarray(r),
                                   rtol=2e-2, atol=2e-2)

    print("KERNEL_OK")
</pallas_src>

<mosaic_0001>
module attributes {stable_mosaic.version = 11 : i64} {
  func.func @cde_fused_kernel(%arg0: i32, %arg1: memref<16x16xbf16, #tpu.memory_space<vmem>>, %arg2: memref<16x128xbf16, #tpu.memory_space<vmem>>, %arg3: memref<2x128xf32, #tpu.memory_space<vmem>>, %arg4: memref<128x128xbf16, #tpu.memory_space<vmem>>, %arg5: memref<16x128xf32, #tpu.memory_space<vmem>>) attributes {dimension_semantics = [#tpu.dimension_semantics<parallel>], iteration_bounds = array<i64: 1>, scalar_prefetch = 0 : i64, scratch_operands = 0 : i64, tpu.core_type = #tpu.core_type<tc>, window_params = [{transform_indices = @transform_0, window_bounds = array<i64: 16, 16>}, {pipeline_mode = #tpu.pipeline_mode<synchronous>, transform_indices = @transform_1, window_bounds = array<i64: 16, 128>}, {pipeline_mode = #tpu.pipeline_mode<synchronous>, transform_indices = @transform_2, window_bounds = array<i64: 2, 128>}, {pipeline_mode = #tpu.pipeline_mode<synchronous>, transform_indices = @transform_3, window_bounds = array<i64: 128, 128>}, {transform_indices = @transform_4, window_bounds = array<i64: 16, 128>}]} {
    %c0 = arith.constant 0 : index
    %c0_0 = arith.constant 0 : index
    %0 = vector.load %arg1[%c0, %c0_0] : memref<16x16xbf16, #tpu.memory_space<vmem>>, vector<16x16xbf16>
    %c0_1 = arith.constant 0 : index
    %c0_2 = arith.constant 0 : index
    %1 = vector.load %arg2[%c0_1, %c0_2] : memref<16x128xbf16, #tpu.memory_space<vmem>>, vector<16x128xbf16>
    %cst = arith.constant dense<0.000000e+00> : vector<16x128xf32>
    %2 = tpu.matmul %0, %1, %cst {dimension_numbers = #tpu.dot_dimension_numbers<[1], [0], [0], [1], [0, 0, 1, 1], [], []>} : vector<16x16xbf16>, vector<16x128xbf16>, vector<16x128xf32> -> vector<16x128xf32>
    %c0_3 = arith.constant 0 : index
    %c0_4 = arith.constant 0 : index
    %3 = vector.load %arg3[%c0_3, %c0_4] : memref<2x128xf32, #tpu.memory_space<vmem>>, vector<1x128xf32>
    %4 = vector.broadcast %3 : vector<1x128xf32> to vector<16x128xf32>
    %5 = arith.addf %2, %4 : vector<16x128xf32>
    %6 = math.tanh %5 : vector<16x128xf32>
    %7 = arith.truncf %6 : vector<16x128xf32> to vector<16x128xbf16>
    %c0_5 = arith.constant 0 : index
    %c0_6 = arith.constant 0 : index
    %8 = vector.load %arg4[%c0_5, %c0_6] : memref<128x128xbf16, #tpu.memory_space<vmem>>, vector<128x128xbf16>
    %cst_7 = arith.constant dense<0.000000e+00> : vector<16x128xf32>
    %9 = tpu.matmul %7, %8, %cst_7 {dimension_numbers = #tpu.dot_dimension_numbers<[1], [0], [0], [1], [0, 0, 1, 1], [], []>} : vector<16x128xbf16>, vector<128x128xbf16>, vector<16x128xf32> -> vector<16x128xf32>
    %c1 = arith.constant 1 : index
    %c0_8 = arith.constant 0 : index
    %10 = vector.load %arg3[%c1, %c0_8] : memref<2x128xf32, #tpu.memory_space<vmem>>, vector<1x128xf32>
    %11 = vector.broadcast %10 : vector<1x128xf32> to vector<16x128xf32>
    %12 = arith.addf %9, %11 : vector<16x128xf32>
    %c0_9 = arith.constant 0 : index
    %c0_10 = arith.constant 0 : index
    %13 = vector.load %arg5[%c0_9, %c0_10] : memref<16x128xf32, #tpu.memory_space<vmem>>, vector<16x128xf32>
    tpu.vector_store %arg5[%c0_9, %c0_10], %12 {strides = array<i32>} : memref<16x128xf32, #tpu.memory_space<vmem>>, vector<16x128xf32>,
    return
  }
  func.func @transform_0(%arg0: i32) -> (i32, i32) {
    %c0_i32 = arith.constant 0 : i32
    %c0_i32_0 = arith.constant 0 : i32
    return %arg0, %c0_i32 : i32, i32
  }
  func.func @transform_1(%arg0: i32) -> (i32, i32) {
    %c0_i32 = arith.constant 0 : i32
    %c0_i32_0 = arith.constant 0 : i32
    %c0_i32_1 = arith.constant 0 : i32
    return %c0_i32, %c0_i32_0 : i32, i32
  }
  func.func @transform_2(%arg0: i32) -> (i32, i32) {
    %c0_i32 = arith.constant 0 : i32
    %c0_i32_0 = arith.constant 0 : i32
    %c0_i32_1 = arith.constant 0 : i32
    return %c0_i32, %c0_i32_0 : i32, i32
  }
  func.func @transform_3(%arg0: i32) -> (i32, i32) {
    %c0_i32 = arith.constant 0 : i32
    %c0_i32_0 = arith.constant 0 : i32
    %c0_i32_1 = arith.constant 0 : i32
    return %c0_i32, %c0_i32_0 : i32, i32
  }
  func.func @transform_4(%arg0: i32) -> (i32, i32) {
    %c0_i32 = arith.constant 0 : i32
    %c0_i32_0 = arith.constant 0 : i32
    return %arg0, %c0_i32 : i32, i32
  }
}

</mosaic_0001>

<llo_original>
// kernel: tpu_custom_call.1
$region0: #{tpu_custom_call.1}
  #allocation0 [shape = 'u32[]', space=smem, size = 0x4, offset = 0x4, fixed_abs, tag = 'smem constant byte address 0x4 - core index']
  #allocation1 [shape = 'u32[144,128]{1,0:T(1,128)}', space=vmem, size = 0x12000, scoped, tag = 'internal scratch']
  %s0 = inlined_call_operand.hbm [shape: bf16[16,16], index: 0, kind: input, shape index: {}]
  %s1 = inlined_call_operand.hbm [shape: bf16[16,128], index: 1, kind: input, shape index: {}]
  %s2 = inlined_call_operand.vmem [shape: f32[2,128], index: 2, kind: input, shape index: {}]
  %s3 = inlined_call_operand.hbm [shape: bf16[128,128], index: 3, kind: input, shape index: {}]
  %s4 = inlined_call_operand.hbm [shape: f32[16,128], index: 4, kind: output, shape index: {}]
  %s5 = sld [smem:[#allocation0]]
  $region38: #{tpu_custom_call.1} parent=0
    _
  %s7 = ssub.s32 1, %s5
  %s8 = scalar_select 0, %s7, %s5
  $region1: #{tpu_custom_call.1} parent=0
    #allocation2 [shape = 'u8[4096]{0}', space=vmem, size = 0x1000, scoped, tag = 'input window, operand 0, single buffered']
    #allocation3 [shape = 's32[1]{0}', space=sflag, size = 0x4, scoped, tag = 'scoped memory for tpu_custom_call.1']
    #allocation4 [shape = 's32[1]{0}', space=sflag, size = 0x4, scoped, tag = 'scoped memory for tpu_custom_call.1']
    #allocation5 [shape = 'u8[4096]{0}', space=vmem, size = 0x1000, scoped, tag = 'input window, operand 1, single buffered']
    #allocation6 [shape = 's32[1]{0}', space=sflag, size = 0x4, scoped, tag = 'scoped memory for tpu_custom_call.1']
    #allocation7 [shape = 'u8[32768]{0}', space=vmem, size = 0x8000, scoped, tag = 'input window, operand 3, single buffered']
    #allocation8 [shape = 'u8[8192]{0}', space=vmem, size = 0x2000, scoped, tag = 'output window, operand 0, single buffered']
    %9 = vsyncpa [#allocation3], 0
    %10 = vsyncpa [#allocation6], 0
    %11 = vsyncpa [#allocation4], 0
    // Predicated region
    $region2: #{tpu_custom_call.1} parent=1 // pred_check
      _
    $region3: #{tpu_custom_call.1} parent=1 // pred_check_branch
      %13 = sbr.rel (0) target = $region5
    $region4: #{tpu_custom_call.1} parent=1 // pred_region
      %s15 = ssub.s32 128, 128
      %16 = vsyncadd [#allocation3], %s15
      %s17 = sshll.u32 [#allocation2], 4
      %s18 = int_to_ptr.vmem [resolvable:$true] %s17
      %23 = dma.hbm_to_vmem [thread:$0]  %s0, 128, %s18, [#allocation3], 64, 64, 4
    $region5: #{tpu_custom_call.1} parent=1 // pred_fallthru
      _
    // Predicated region
    $region6: #{tpu_custom_call.1} parent=1 // pred_check
      _
    $region7: #{tpu_custom_call.1} parent=1 // pred_check_branch
      %25 = sbr.rel (0) target = $region9
    $region8: #{tpu_custom_call.1} parent=1 // pred_region
      %s27 = ssub.s32 128, 128
      %28 = vsyncadd [#allocation6], %s27
      %s29 = sshll.u32 [#allocation5], 4
      %s30 = int_to_ptr.vmem [resolvable:$true] %s29
      %35 = dma.hbm_to_vmem [thread:$0]  %s1, 128, %s30, [#allocation6], 64, 64, 4
    $region9: #{tpu_custom_call.1} parent=1 // pred_fallthru
      _
    // Predicated region
    $region10: #{tpu_custom_call.1} parent=1 // pred_check
      _
    $region11: #{tpu_custom_call.1} parent=1 // pred_check_branch
      %37 = sbr.rel (0) target = $region13
    $region12: #{tpu_custom_call.1} parent=1 // pred_region
      _
    $region13: #{tpu_custom_call.1} parent=1 // pred_fallthru
      _
    // Predicated region
    $region14: #{tpu_custom_call.1} parent=1 // pred_check
      _
    $region15: #{tpu_custom_call.1} parent=1 // pred_check_branch
      %39 = sbr.rel (0) target = $region17
    $region16: #{tpu_custom_call.1} parent=1 // pred_region
      %s41 = ssub.s32 1024, 1024
      %42 = vsyncadd [#allocation6], %s41
      %s43 = sshll.u32 [#allocation7], 4
      %s44 = int_to_ptr.vmem [resolvable:$true] %s43
      %49 = dma.hbm_to_vmem [thread:$0]  %s3, 1024, %s44, [#allocation6], 64, 64, 4
    $region17: #{tpu_custom_call.1} parent=1 // pred_fallthru
      _
    // Predicated region
    $region18: #{tpu_custom_call.1} parent=1 // pred_check
      _
    $region19: #{tpu_custom_call.1} parent=1 // pred_check_branch
      %51 = sbr.rel (0) target = $region21
    $region20: #{tpu_custom_call.1} parent=1 // pred_region
      %52 = dma.done [#allocation3], 128
    $region21: #{tpu_custom_call.1} parent=1 // pred_fallthru
      _
    // Predicated region
    $region22: #{tpu_custom_call.1} parent=1 // pred_check
      _
    $region23: #{tpu_custom_call.1} parent=1 // pred_check_branch
      %54 = sbr.rel (0) target = $region25
    $region24: #{tpu_custom_call.1} parent=1 // pred_region
      %55 = dma.done [#allocation6], 128
    $region25: #{tpu_custom_call.1} parent=1 // pred_fallthru
      _
    // Predicated region
    $region26: #{tpu_custom_call.1} parent=1 // pred_check
      _
    $region27: #{tpu_custom_call.1} parent=1 // pred_check_branch
      %57 = sbr.rel (0) target = $region29
    $region28: #{tpu_custom_call.1} parent=1 // pred_region
      %58 = dma.done [#allocation6], 1024
    $region29: #{tpu_custom_call.1} parent=1 // pred_fallthru
      _
    %v60 = vld [vmem:[#allocation2] sm:$0xf]
    %v61 = vld [vmem:[#allocation2 + $0x4] sm:$0xf]
    %v62 = vld [vmem:[#allocation5] sm:$0xf]
    %v63 = vld [vmem:[#allocation5 + $0x4] sm:$0xf]
    %v64 = vld [vmem:[%s2] sm:$0x1]
    %v65 = vlaneseq
    %v66 = vshrl.u32 %v65, 7
    %v67 = vsub.s32 0, %v66
    %v68 = vrot.slane %v64, %v67
    %v71 = vunpack.c.l.b16 %v60
    %v72 = vunpack.c.l.b16 %v61
    %v73 = vpack.c.b16 %v72, %v71
    %v76 = vunpack.c.l.b16 %v62
    %v77 = vunpack.c.l.b16 %v63
    %v78 = vpack.c.b16 %v77, %v76
    %vm80 = vcmask 130048
    %v82 = vsel %vm80, %v73, 0
    %84 = vmatprep.subr.bf16.mxu0 0
    %85 = vmatpush1.bf16.msra.mxu0 %v78
    %86 = vmatprep.subr.bf16.mxu0 0
    %87 = vmatpush1.bf16.msra.mxu0 0
    %88 = vmatprep.subr.bf16.mxu0 0
    %89 = vmatpush1.bf16.msra.mxu0 0
    %90 = vmatprep.subr.bf16.mxu0 0
    %91 = vmatpush1.bf16.msra.mxu0 0
    %92 = vmatprep.subr.bf16.mxu0 0
    %93 = vmatpush1.bf16.msra.mxu0 0
    %94 = vmatprep.subr.bf16.mxu0 0
    %95 = vmatpush1.bf16.msra.mxu0 0
    %96 = vmatprep.subr.bf16.mxu0 0
    %97 = vmatpush1.bf16.msra.mxu0 0
    %98 = vmatprep.subr.bf16.mxu0 0
    %99 = vmatpush1.bf16.msra.mxu0 0
    %100 = vmatprep.subr.bf16.mxu0 0
    %101 = vmatpush1.bf16.msra.mxu0 0
    %102 = vmatprep.subr.bf16.mxu0 0
    %103 = vmatpush1.bf16.msra.mxu0 0
    %104 = vmatprep.subr.bf16.mxu0 0
    %105 = vmatpush1.bf16.msra.mxu0 0
    %106 = vmatprep.subr.bf16.mxu0 0
    %107 = vmatpush1.bf16.msra.mxu0 0
    %108 = vmatprep.subr.bf16.mxu0 0
    %109 = vmatpush1.bf16.msra.mxu0 0
    %110 = vmatprep.subr.bf16.mxu0 0
    %111 = vmatpush1.bf16.msra.mxu0 0
    %112 = vmatprep.subr.bf16.mxu0 0
    %113 = vmatpush1.bf16.msra.mxu0 0
    %114 = vmatprep.subr.bf16.mxu0 0
    %115 = vmatpush1.bf16.msra.mxu0 0
    %116 = vmatprep.mubr.bf16.mxu0 0
    %117 = vmatmul.mubr.bf16.gmra.mrb[0].mxu0 %v82
    %v118 = vpop.f32.mrb[0].mxu0
    %v119 = vadd.f32 %v68, %v118
    %v120 = vpop.f32.mrb[0].mxu0
    %v121 = vpop.f32.mrb[0].mxu0
    %v122 = vadd.f32 %v68, %v121
    %v123 = vpop.f32.mrb[0].mxu0
    %124 = vdwg.mxu0
    %v125 = vtanh.pop %v119
    %v126 = vtanh.pop %v122
    %v127 = vpack.c.bf16 %v126, %v125
    %v128 = vld [vmem:[#allocation7] sm:$0xf]
    %v129 = vld [vmem:[#allocation7 + $0x4] sm:$0xf]
    %v130 = vld [vmem:[#allocation7 + $0x8] sm:$0xf]
    %v131 = vld [vmem:[#allocation7 + $0xc] sm:$0xf]
    %v132 = vld [vmem:[#allocation7 + $0x10] sm:$0xf]
    %v133 = vld [vmem:[#allocation7 + $0x14] sm:$0xf]
    %v134 = vld [vmem:[#allocation7 + $0x18] sm:$0xf]
    %v135 = vld [vmem:[#allocation7 + $0x1c] sm:$0xf]
    %v136 = vld [vmem:[#allocation7 + $0x20] sm:$0xf]
    %v137 = vld [vmem:[#allocation7 + $0x24] sm:$0xf]
    %v138 = vld [vmem:[#allocation7 + $0x28] sm:$0xf]
    %v139 = vld [vmem:[#allocation7 + $0x2c] sm:$0xf]
    %v140 = vld [vmem:[#allocation7 + $0x30] sm:$0xf]
    %v141 = vld [vmem:[#allocation7 + $0x34] sm:$0xf]
    %v142 = vld [vmem:[#allocation7 + $0x38] sm:$0xf]
    %v143 = vld [vmem:[#allocation7 + $0x3c] sm:$0xf]
    %v144 = vld [vmem:[%s2 + $0x1] sm:$0x1]
    %v145 = vlaneseq
    %v146 = vshrl.u32 %v145, 7
    %v147 = vsub.s32 0, %v146
    %v148 = vrot.slane %v144, %v147
    %v165 = vunpack.c.l.b16 %v128
    %v166 = vunpack.c.l.b16 %v129
    %v167 = vunpack.c.l.b16 %v130
    %v168 = vunpack.c.l.b16 %v131
    %v169 = vunpack.c.l.b16 %v132
    %v170 = vunpack.c.l.b16 %v133
    %v171 = vunpack.c.l.b16 %v134
    %v172 = vunpack.c.l.b16 %v135
    %v173 = vunpack.c.l.b16 %v136
    %v174 = vunpack.c.l.b16 %v137
    %v175 = vunpack.c.l.b16 %v138
    %v176 = vunpack.c.l.b16 %v139
    %v177 = vunpack.c.l.b16 %v140
    %v178 = vunpack.c.l.b16 %v141
    %v179 = vunpack.c.l.b16 %v142
    %v180 = vunpack.c.l.b16 %v143
    %v181 = vpack.c.b16 %v166, %v165
    %v182 = vpack.c.b16 %v168, %v167
    %v183 = vpack.c.b16 %v170, %v169
    %v184 = vpack.c.b16 %v172, %v171
    %v185 = vpack.c.b16 %v174, %v173
    %v186 = vpack.c.b16 %v176, %v175
    %v187 = vpack.c.b16 %v178, %v177
    %v188 = vpack.c.b16 %v180, %v179
    %197 = vmatprep.subr.bf16.mxu0 0
    %198 = vmatpush1.bf16.msra.mxu0 %v181
    %199 = vmatprep.subr.bf16.mxu0 0
    %200 = vmatpush1.bf16.msra.mxu0 %v182
    %201 = vmatprep.subr.bf16.mxu0 0
    %202 = vmatpush1.bf16.msra.mxu0 %v183
    %203 = vmatprep.subr.bf16.mxu0 0
    %204 = vmatpush1.bf16.msra.mxu0 %v184
    %205 = vmatprep.subr.bf16.mxu0 0
    %206 = vmatpush1.bf16.msra.mxu0 %v185
    %207 = vmatprep.subr.bf16.mxu0 0
    %208 = vmatpush1.bf16.msra.mxu0 %v186
    %209 = vmatprep.subr.bf16.mxu0 0
    %210 = vmatpush1.bf16.msra.mxu0 %v187
    %211 = vmatprep.subr.bf16.mxu0 0
    %212 = vmatpush1.bf16.msra.mxu0 %v188
    %213 = vmatprep.subr.bf16.mxu0 0
    %214 = vmatpush1.bf16.msra.mxu0 0
    %215 = vmatprep.subr.bf16.mxu0 0
    %216 = vmatpush1.bf16.msra.mxu0 0
    %217 = vmatprep.subr.bf16.mxu0 0
    %218 = vmatpush1.bf16.msra.mxu0 0
    %219 = vmatprep.subr.bf16.mxu0 0
    %220 = vmatpush1.bf16.msra.mxu0 0
    %221 = vmatprep.subr.bf16.mxu0 0
    %222 = vmatpush1.bf16.msra.mxu0 0
    %223 = vmatprep.subr.bf16.mxu0 0
    %224 = vmatpush1.bf16.msra.mxu0 0
    %225 = vmatprep.subr.bf16.mxu0 0
    %226 = vmatpush1.bf16.msra.mxu0 0
    %227 = vmatprep.subr.bf16.mxu0 0
    %228 = vmatpush1.bf16.msra.mxu0 0
    %229 = vmatprep.mubr.bf16.mxu0 0
    %230 = vmatmul.mubr.bf16.gmra.mrb[0].mxu0 %v127
    %v231 = vpop.f32.mrb[0].mxu0
    %v232 = vadd.f32 %v148, %v231
    %v233 = vpop.f32.mrb[0].mxu0
    %v234 = vpop.f32.mrb[0].mxu0
    %v235 = vadd.f32 %v148, %v234
    %v236 = vpop.f32.mrb[0].mxu0
    %237 = vdwg.mxu0
    %238 = vst [vmem:[#allocation8] sm:$0xff] %v232
    %239 = vst [vmem:[#allocation8 + $0x8] sm:$0xff] %v235
    // Predicated region
    $region30: #{tpu_custom_call.1} parent=1 // pred_check
      _
    $region31: #{tpu_custom_call.1} parent=1 // pred_check_branch
      %241 = sbr.rel (0) target = $region33
    $region32: #{tpu_custom_call.1} parent=1 // pred_region
      %s243 = ssub.s32 256, 256
      %244 = vsyncadd [#allocation4], %s243
      %s245 = sshll.u32 [#allocation8], 4
      %s246 = int_to_ptr.vmem [resolvable:$true] %s245
      %251 = dma.vmem_to_hbm [thread:$0]  %s246, 256, %s4, [#allocation4], 128, 128, 8
    $region33: #{tpu_custom_call.1} parent=1 // pred_fallthru
      _
    // Predicated region
    $region34: #{tpu_custom_call.1} parent=1 // pred_check
      _
    $region35: #{tpu_custom_call.1} parent=1 // pred_check_branch
      %253 = sbr.rel (0) target = $region37
    $region36: #{tpu_custom_call.1} parent=1 // pred_region
      %254 = dma.done [#allocation4], 256
    $region37: #{tpu_custom_call.1} parent=1 // pred_fallthru
      _
    %255 = vsyncpa [#allocation3], 1
    %256 = vsyncpa [#allocation6], 1
    %257 = vsyncpa [#allocation4], 1

</llo_original>
